<compile_context>
chip_gen: v5e
topology: v5e:2x2
jax: 0.10.0
libtpu: 0.0.40
codegen_flags: <defaults>
</compile_context>

<pallas_src>
import functools
import math

import jax
import jax.numpy as jnp
from jax.experimental import pallas as pl
from jax.experimental.pallas import tpu as pltpu


def _masked_msa_head_kernel(m_ref, w_ref, b_ref, o_ref):
    # m_ref: (TM, C_m)   w_ref: (C_m, C_out)   b_ref: (1, C_out) f32
    # Native-dtype operands straight to the MXU, f32 accumulation.
    logits = jnp.dot(m_ref[...], w_ref[...],
                     preferred_element_type=jnp.float32)
    o_ref[...] = (logits + b_ref[...]).astype(o_ref.dtype)


@functools.partial(jax.jit, static_argnames=("tm",))
def masked_msa_head(m, weight, bias, *, tm=2048):
    """m: [*, N_seq, N_res, C_m]; weight: [num_classes, C_m] (torch layout);
    bias: [num_classes]. Returns [*, N_seq, N_res, num_classes]."""
    *lead, c_m = m.shape
    num_classes = weight.shape[0]

    rows = math.prod(lead) if lead else 1
    m2 = m.reshape(rows, c_m)                      # no copy

    w = weight.T.astype(m.dtype)                   # (C_m, C_out), MXU layout
    b = bias.astype(jnp.float32).reshape(1, num_classes)

    # Row-tile: as large as possible (HBM-bound), clamped to the array and
    # kept a multiple of 8 (sublane) when it is not the full dimension.
    tm_eff = min(tm, rows)
    if tm_eff < rows:
        tm_eff = max(8, (tm_eff // 8) * 8)
    grid = pl.cdiv(rows, tm_eff)                   # partial last block OK

    out = pl.pallas_call(
        _masked_msa_head_kernel,
        out_shape=jax.ShapeDtypeStruct((rows, num_classes), m.dtype),
        grid_spec=pltpu.PrefetchScalarGridSpec(
            num_scalar_prefetch=0,
            grid=(grid,),
            in_specs=[
                pl.BlockSpec((tm_eff, c_m), lambda i: (i, 0)),
                pl.BlockSpec((c_m, num_classes), lambda i: (0, 0)),
                pl.BlockSpec((1, num_classes), lambda i: (0, 0)),
            ],
            out_specs=pl.BlockSpec((tm_eff, num_classes), lambda i: (i, 0)),
        ),
        compiler_params=pltpu.CompilerParams(
            dimension_semantics=("parallel",)),     # megacore-shardable rows
    )(m2, w, b)

    return out.reshape(*lead, num_classes)


if __name__ == "__main__":
    # Small shapes consistent with the module: [*, N_seq, N_res, C_m]
    # (n_res=20 so rows=320 exercises a partial last tile at tm=128).
    batch, n_seq, n_res, c_m = 2, 8, 20, 32
    num_classes = 23

    key = jax.random.PRNGKey(0)
    k_m, k_w, k_b = jax.random.split(key, 3)

    m = jax.random.normal(k_m, (batch, n_seq, n_res, c_m), dtype=jnp.float32)
    # NOTE: AlphaFold's init='final' would zero-init the weight; we use small
    # deterministic random weights so the kernel result is non-trivial.
    weight = 0.02 * jax.random.normal(k_w, (num_classes, c_m), dtype=jnp.float32)
    bias = 0.01 * jax.random.normal(k_b, (num_classes,), dtype=jnp.float32)

    ref = jnp.einsum("bsrc,oc->bsro", m, weight) + bias

    # 1) Default (large tile -> single full block, grid=1).
    out = jax.block_until_ready(masked_msa_head(m, weight, bias))
    assert out.shape == (batch, n_seq, n_res, num_classes)
    assert jnp.allclose(out, ref, atol=1e-5, rtol=1e-5)

    # 2) Small tile -> multi-block grid with a masked partial last block
    #    (rows=320, tm=128 -> 3 grid steps), no pad/slice copies needed.
    out_small = jax.block_until_ready(masked_msa_head(m, weight, bias, tm=128))
    assert jnp.allclose(out_small, ref, atol=1e-5, rtol=1e-5)

    # 3) bf16 end-to-end (halves HBM read traffic; f32 accumulation on MXU).
    m_bf = m.astype(jnp.bfloat16)
    w_bf = weight.astype(jnp.bfloat16)
    b_bf = bias.astype(jnp.bfloat16)
    out_bf = jax.block_until_ready(masked_msa_head(m_bf, w_bf, b_bf))
    ref_bf = (jnp.einsum("bsrc,oc->bsro",
                         m_bf.astype(jnp.float32), w_bf.astype(jnp.float32))
              + b_bf.astype(jnp.float32))
    assert out_bf.dtype == jnp.bfloat16
    assert jnp.allclose(out_bf.astype(jnp.float32), ref_bf,
                        atol=1e-2, rtol=1e-2)

    print("KERNEL_OK")
</pallas_src>

<mosaic_0001>
module attributes {stable_mosaic.version = 11 : i64} {
  func.func @_masked_msa_head_kernel(%arg0: i32, %arg1: memref<320x32xf32, #tpu.memory_space<vmem>>, %arg2: memref<32x23xf32, #tpu.memory_space<vmem>>, %arg3: memref<1x23xf32, #tpu.memory_space<vmem>>, %arg4: memref<320x23xf32, #tpu.memory_space<vmem>>) attributes {dimension_semantics = [#tpu.dimension_semantics<parallel>], iteration_bounds = array<i64: 1>, scalar_prefetch = 0 : i64, scratch_operands = 0 : i64, tpu.core_type = #tpu.core_type<tc>, window_params = [{transform_indices = @transform_0, window_bounds = array<i64: 320, 32>}, {pipeline_mode = #tpu.pipeline_mode<synchronous>, transform_indices = @transform_1, window_bounds = array<i64: 32, 23>}, {pipeline_mode = #tpu.pipeline_mode<synchronous>, transform_indices = @transform_2, window_bounds = array<i64: 1, 23>}, {transform_indices = @transform_3, window_bounds = array<i64: 320, 23>}]} {
    %c0 = arith.constant 0 : index
    %c0_0 = arith.constant 0 : index
    %0 = vector.load %arg1[%c0, %c0_0] : memref<320x32xf32, #tpu.memory_space<vmem>>, vector<320x32xf32>
    %c0_1 = arith.constant 0 : index
    %c0_2 = arith.constant 0 : index
    %1 = vector.load %arg2[%c0_1, %c0_2] : memref<32x23xf32, #tpu.memory_space<vmem>>, vector<32x23xf32>
    %cst = arith.constant dense<0.000000e+00> : vector<320x23xf32>
    %2 = tpu.matmul %0, %1, %cst {dimension_numbers = #tpu.dot_dimension_numbers<[1], [0], [0], [1], [0, 0, 1, 1], [], []>} : vector<320x32xf32>, vector<32x23xf32>, vector<320x23xf32> -> vector<320x23xf32>
    %c0_3 = arith.constant 0 : index
    %c0_4 = arith.constant 0 : index
    %3 = vector.load %arg3[%c0_3, %c0_4] : memref<1x23xf32, #tpu.memory_space<vmem>>, vector<1x23xf32>
    %4 = vector.broadcast %3 : vector<1x23xf32> to vector<320x23xf32>
    %5 = arith.addf %2, %4 : vector<320x23xf32>
    %c0_5 = arith.constant 0 : index
    %c0_6 = arith.constant 0 : index
    %6 = vector.load %arg4[%c0_5, %c0_6] : memref<320x23xf32, #tpu.memory_space<vmem>>, vector<320x23xf32>
    tpu.vector_store %arg4[%c0_5, %c0_6], %5 {strides = array<i32>} : memref<320x23xf32, #tpu.memory_space<vmem>>, vector<320x23xf32>,
    return
  }
  func.func @transform_0(%arg0: i32) -> (i32, i32) {
    %c0_i32 = arith.constant 0 : i32
    %c0_i32_0 = arith.constant 0 : i32
    return %arg0, %c0_i32 : i32, i32
  }
  func.func @transform_1(%arg0: i32) -> (i32, i32) {
    %c0_i32 = arith.constant 0 : i32
    %c0_i32_0 = arith.constant 0 : i32
    %c0_i32_1 = arith.constant 0 : i32
    return %c0_i32, %c0_i32_0 : i32, i32
  }
  func.func @transform_2(%arg0: i32) -> (i32, i32) {
    %c0_i32 = arith.constant 0 : i32
    %c0_i32_0 = arith.constant 0 : i32
    %c0_i32_1 = arith.constant 0 : i32
    return %c0_i32, %c0_i32_0 : i32, i32
  }
  func.func @transform_3(%arg0: i32) -> (i32, i32) {
    %c0_i32 = arith.constant 0 : i32
    %c0_i32_0 = arith.constant 0 : i32
    return %arg0, %c0_i32 : i32, i32
  }
}

</mosaic_0001>

<llo_original>
// kernel: masked_msa_head.1
$region0: #{masked_msa_head.1}
  #allocation0 [shape = 'u32[]', space=smem, size = 0x4, offset = 0x4, fixed_abs, tag = 'smem constant byte address 0x4 - core index']
  #allocation1 [shape = 'u32[72,128]{1,0:T(1,128)}', space=vmem, size = 0x9000, scoped, tag = 'internal scratch']
  %s0 = inlined_call_operand.vmem [shape: f32[320,32], index: 0, kind: input, shape index: {}]
  %s1 = inlined_call_operand.vmem [shape: f32[32,23], index: 1, kind: input, shape index: {}]
  %s2 = inlined_call_operand.vmem [shape: f32[1,23], index: 2, kind: input, shape index: {}]
  %s3 = inlined_call_operand.vmem [shape: f32[320,23], index: 3, kind: output, shape index: {}]
  %s4 = sld [smem:[#allocation0]]
  $region22: #{masked_msa_head.1} parent=0
    _
  %s6 = ssub.s32 1, %s4
  %s7 = scalar_select 0, %s6, %s4
  // Predicated region
  $region2: #{masked_msa_head.1} parent=0 // pred_check
    _
  $region3: #{masked_msa_head.1} parent=0 // pred_check_branch
    %9 = sbr.rel (0) target = $region5
  $region4: #{masked_msa_head.1} parent=0 // pred_region
    _
  $region5: #{masked_msa_head.1} parent=0 // pred_fallthru
    _
  // Predicated region
  $region6: #{masked_msa_head.1} parent=0 // pred_check
    _
  $region7: #{masked_msa_head.1} parent=0 // pred_check_branch
    %11 = sbr.rel (0) target = $region9
  $region8: #{masked_msa_head.1} parent=0 // pred_region
    _
  $region9: #{masked_msa_head.1} parent=0 // pred_fallthru
    _
  // Predicated region
  $region10: #{masked_msa_head.1} parent=0 // pred_check
    _
  $region11: #{masked_msa_head.1} parent=0 // pred_check_branch
    %13 = sbr.rel (0) target = $region13
  $region12: #{masked_msa_head.1} parent=0 // pred_region
    _
  $region13: #{masked_msa_head.1} parent=0 // pred_fallthru
    _
  %v14 = vld [vmem:[%s0] sm:$0xff]
  %v15 = vld [vmem:[%s0 + $0x8] sm:$0xff]
  %v16 = vld [vmem:[%s0 + $0x10] sm:$0xff]
  %v17 = vld [vmem:[%s0 + $0x18] sm:$0xff]
  %v18 = vld [vmem:[%s0 + $0x20] sm:$0xff]
  %v19 = vld [vmem:[%s0 + $0x28] sm:$0xff]
  %v20 = vld [vmem:[%s0 + $0x30] sm:$0xff]
  %v21 = vld [vmem:[%s0 + $0x38] sm:$0xff]
  %v22 = vld [vmem:[%s0 + $0x40] sm:$0xff]
  %v23 = vld [vmem:[%s0 + $0x48] sm:$0xff]
  %v24 = vld [vmem:[%s0 + $0x50] sm:$0xff]
  %v25 = vld [vmem:[%s0 + $0x58] sm:$0xff]
  %v26 = vld [vmem:[%s0 + $0x60] sm:$0xff]
  %v27 = vld [vmem:[%s0 + $0x68] sm:$0xff]
  %v28 = vld [vmem:[%s0 + $0x70] sm:$0xff]
  %v29 = vld [vmem:[%s0 + $0x78] sm:$0xff]
  %v30 = vld [vmem:[%s0 + $0x80] sm:$0xff]
  %v31 = vld [vmem:[%s0 + $0x88] sm:$0xff]
  %v32 = vld [vmem:[%s0 + $0x90] sm:$0xff]
  %v33 = vld [vmem:[%s0 + $0x98] sm:$0xff]
  %v34 = vld [vmem:[%s0 + $0xa0] sm:$0xff]
  %v35 = vld [vmem:[%s0 + $0xa8] sm:$0xff]
  %v36 = vld [vmem:[%s0 + $0xb0] sm:$0xff]
  %v37 = vld [vmem:[%s0 + $0xb8] sm:$0xff]
  %v38 = vld [vmem:[%s0 + $0xc0] sm:$0xff]
  %v39 = vld [vmem:[%s0 + $0xc8] sm:$0xff]
  %v40 = vld [vmem:[%s0 + $0xd0] sm:$0xff]
  %v41 = vld [vmem:[%s0 + $0xd8] sm:$0xff]
  %v42 = vld [vmem:[%s0 + $0xe0] sm:$0xff]
  %v43 = vld [vmem:[%s0 + $0xe8] sm:$0xff]
  %v44 = vld [vmem:[%s0 + $0xf0] sm:$0xff]
  %v45 = vld [vmem:[%s0 + $0xf8] sm:$0xff]
  %v46 = vld [vmem:[%s0 + $0x100] sm:$0xff]
  %v47 = vld [vmem:[%s0 + $0x108] sm:$0xff]
  %v48 = vld [vmem:[%s0 + $0x110] sm:$0xff]
  %v49 = vld [vmem:[%s0 + $0x118] sm:$0xff]
  %v50 = vld [vmem:[%s0 + $0x120] sm:$0xff]
  %v51 = vld [vmem:[%s0 + $0x128] sm:$0xff]
  %v52 = vld [vmem:[%s0 + $0x130] sm:$0xff]
  %v53 = vld [vmem:[%s0 + $0x138] sm:$0xff]
  %v54 = vld [vmem:[%s1] sm:$0xff]
  %v55 = vld [vmem:[%s1 + $0x8] sm:$0xff]
  %v56 = vld [vmem:[%s1 + $0x10] sm:$0xff]
  %v57 = vld [vmem:[%s1 + $0x18] sm:$0xff]
  %v58 = vld [vmem:[%s2] sm:$0x1]
  %v60 = vperm.slane %v58, 0
  %vm62 = vcmask 261120
  %v64 = vsel %vm62, %v14, 0
  %v67 = vsel %vm62, %v15, 0
  %v70 = vsel %vm62, %v16, 0
  %v73 = vsel %vm62, %v17, 0
  %v76 = vsel %vm62, %v18, 0
  %v79 = vsel %vm62, %v19, 0
  %v82 = vsel %vm62, %v20, 0
  %v85 = vsel %vm62, %v21, 0
  %v88 = vsel %vm62, %v22, 0
  %v91 = vsel %vm62, %v23, 0
  %v94 = vsel %vm62, %v24, 0
  %v97 = vsel %vm62, %v25, 0
  %v100 = vsel %vm62, %v26, 0
  %v103 = vsel %vm62, %v27, 0
  %v106 = vsel %vm62, %v28, 0
  %v109 = vsel %vm62, %v29, 0
  %v112 = vsel %vm62, %v30, 0
  %v115 = vsel %vm62, %v31, 0
  %v118 = vsel %vm62, %v32, 0
  %v121 = vsel %vm62, %v33, 0
  %v124 = vsel %vm62, %v34, 0
  %v127 = vsel %vm62, %v35, 0
  %v130 = vsel %vm62, %v36, 0
  %v133 = vsel %vm62, %v37, 0
  %v136 = vsel %vm62, %v38, 0
  %v139 = vsel %vm62, %v39, 0
  %v142 = vsel %vm62, %v40, 0
  %v145 = vsel %vm62, %v41, 0
  %v148 = vsel %vm62, %v42, 0
  %v151 = vsel %vm62, %v43, 0
  %v154 = vsel %vm62, %v44, 0
  %v157 = vsel %vm62, %v45, 0
  %v160 = vsel %vm62, %v46, 0
  %v163 = vsel %vm62, %v47, 0
  %v166 = vsel %vm62, %v48, 0
  %v169 = vsel %vm62, %v49, 0
  %v172 = vsel %vm62, %v50, 0
  %v175 = vsel %vm62, %v51, 0
  %v178 = vsel %vm62, %v52, 0
  %v181 = vsel %vm62, %v53, 0
  %183 = vmatpush.msra.mxu0 0.0
  %184 = vmatpush.msra.mxu0 0.0
  %185 = vmatpush.msra.mxu0 0.0
  %186 = vmatpush.msra.mxu0 0.0
  %187 = vmatpush.msra.mxu0 0.0
  %188 = vmatpush.msra.mxu0 0.0
  %189 = vmatpush.msra.mxu0 0.0
  %190 = vmatpush.msra.mxu0 0.0
  %191 = vmatpush.msra.mxu0 0.0
  %192 = vmatpush.msra.mxu0 0.0
  %193 = vmatpush.msra.mxu0 0.0
  %194 = vmatpush.msra.mxu0 0.0
  %195 = vmatpush.msra.mxu0 %v57
  %196 = vmatpush.msra.mxu0 %v56
  %197 = vmatpush.msra.mxu0 %v55
  %198 = vmatpush.msra.mxu0 %v54
  %199 = vmatmul.f32.gmra.mxu0 %v64
  %v200 = vpop.f32.mrf.mxu0
  %v201 = vadd.f32 %v60, %v200
  %202 = vmatmul.f32.gmra.mxu0 %v67
  %v203 = vpop.f32.mrf.mxu0
  %v204 = vadd.f32 %v60, %v203
  %205 = vmatmul.f32.gmra.mxu0 %v70
  %v206 = vpop.f32.mrf.mxu0
  %v207 = vadd.f32 %v60, %v206
  %208 = vmatmul.f32.gmra.mxu0 %v73
  %v209 = vpop.f32.mrf.mxu0
  %v210 = vadd.f32 %v60, %v209
  %211 = vmatmul.f32.gmra.mxu0 %v76
  %v212 = vpop.f32.mrf.mxu0
  %v213 = vadd.f32 %v60, %v212
  %214 = vmatmul.f32.gmra.mxu0 %v79
  %v215 = vpop.f32.mrf.mxu0
  %v216 = vadd.f32 %v60, %v215
  %217 = vmatmul.f32.gmra.mxu0 %v82
  %v218 = vpop.f32.mrf.mxu0
  %v219 = vadd.f32 %v60, %v218
  %220 = vmatmul.f32.gmra.mxu0 %v85
  %v221 = vpop.f32.mrf.mxu0
  %v222 = vadd.f32 %v60, %v221
  %223 = vmatmul.f32.gmra.mxu0 %v88
  %v224 = vpop.f32.mrf.mxu0
  %v225 = vadd.f32 %v60, %v224
  %226 = vmatmul.f32.gmra.mxu0 %v91
  %v227 = vpop.f32.mrf.mxu0
  %v228 = vadd.f32 %v60, %v227
  %229 = vmatmul.f32.gmra.mxu0 %v94
  %v230 = vpop.f32.mrf.mxu0
  %v231 = vadd.f32 %v60, %v230
  %232 = vmatmul.f32.gmra.mxu0 %v97
  %v233 = vpop.f32.mrf.mxu0
  %v234 = vadd.f32 %v60, %v233
  %235 = vmatmul.f32.gmra.mxu0 %v100
  %v236 = vpop.f32.mrf.mxu0
  %v237 = vadd.f32 %v60, %v236
  %238 = vmatmul.f32.gmra.mxu0 %v103
  %v239 = vpop.f32.mrf.mxu0
  %v240 = vadd.f32 %v60, %v239
  %241 = vmatmul.f32.gmra.mxu0 %v106
  %v242 = vpop.f32.mrf.mxu0
  %v243 = vadd.f32 %v60, %v242
  %244 = vmatmul.f32.gmra.mxu0 %v109
  %v245 = vpop.f32.mrf.mxu0
  %v246 = vadd.f32 %v60, %v245
  %247 = vmatmul.f32.gmra.mxu0 %v112
  %v248 = vpop.f32.mrf.mxu0
  %v249 = vadd.f32 %v60, %v248
  %250 = vmatmul.f32.gmra.mxu0 %v115
  %v251 = vpop.f32.mrf.mxu0
  %v252 = vadd.f32 %v60, %v251
  %253 = vmatmul.f32.gmra.mxu0 %v118
  %v254 = vpop.f32.mrf.mxu0
  %v255 = vadd.f32 %v60, %v254
  %256 = vmatmul.f32.gmra.mxu0 %v121
  %v257 = vpop.f32.mrf.mxu0
  %v258 = vadd.f32 %v60, %v257
  %259 = vmatmul.f32.gmra.mxu0 %v124
  %v260 = vpop.f32.mrf.mxu0
  %v261 = vadd.f32 %v60, %v260
  %262 = vmatmul.f32.gmra.mxu0 %v127
  %v263 = vpop.f32.mrf.mxu0
  %v264 = vadd.f32 %v60, %v263
  %265 = vmatmul.f32.gmra.mxu0 %v130
  %v266 = vpop.f32.mrf.mxu0
  %v267 = vadd.f32 %v60, %v266
  %268 = vmatmul.f32.gmra.mxu0 %v133
  %v269 = vpop.f32.mrf.mxu0
  %v270 = vadd.f32 %v60, %v269
  %271 = vmatmul.f32.gmra.mxu0 %v136
  %v272 = vpop.f32.mrf.mxu0
  %v273 = vadd.f32 %v60, %v272
  %274 = vmatmul.f32.gmra.mxu0 %v139
  %v275 = vpop.f32.mrf.mxu0
  %v276 = vadd.f32 %v60, %v275
  %277 = vmatmul.f32.gmra.mxu0 %v142
  %v278 = vpop.f32.mrf.mxu0
  %v279 = vadd.f32 %v60, %v278
  %280 = vmatmul.f32.gmra.mxu0 %v145
  %v281 = vpop.f32.mrf.mxu0
  %v282 = vadd.f32 %v60, %v281
  %283 = vmatmul.f32.gmra.mxu0 %v148
  %v284 = vpop.f32.mrf.mxu0
  %v285 = vadd.f32 %v60, %v284
  %286 = vmatmul.f32.gmra.mxu0 %v151
  %v287 = vpop.f32.mrf.mxu0
  %v288 = vadd.f32 %v60, %v287
  %289 = vmatmul.f32.gmra.mxu0 %v154
  %v290 = vpop.f32.mrf.mxu0
  %v291 = vadd.f32 %v60, %v290
  %292 = vmatmul.f32.gmra.mxu0 %v157
  %v293 = vpop.f32.mrf.mxu0
  %v294 = vadd.f32 %v60, %v293
  %295 = vmatmul.f32.gmra.mxu0 %v160
  %v296 = vpop.f32.mrf.mxu0
  %v297 = vadd.f32 %v60, %v296
  %298 = vmatmul.f32.gmra.mxu0 %v163
  %v299 = vpop.f32.mrf.mxu0
  %v300 = vadd.f32 %v60, %v299
  %301 = vmatmul.f32.gmra.mxu0 %v166
  %v302 = vpop.f32.mrf.mxu0
  %v303 = vadd.f32 %v60, %v302
  %304 = vmatmul.f32.gmra.mxu0 %v169
  %v305 = vpop.f32.mrf.mxu0
  %v306 = vadd.f32 %v60, %v305
  %307 = vmatmul.f32.gmra.mxu0 %v172
  %v308 = vpop.f32.mrf.mxu0
  %v309 = vadd.f32 %v60, %v308
  %310 = vmatmul.f32.gmra.mxu0 %v175
  %v311 = vpop.f32.mrf.mxu0
  %v312 = vadd.f32 %v60, %v311
  %313 = vmatmul.f32.gmra.mxu0 %v178
  %v314 = vpop.f32.mrf.mxu0
  %v315 = vadd.f32 %v60, %v314
  %316 = vmatmul.f32.gmra.mxu0 %v181
  %v317 = vpop.f32.mrf.mxu0
  %v318 = vadd.f32 %v60, %v317
  %319 = vdwg.mxu0
  %vm320 = vcmask 187392
  %321 = vst.msk [vmem:[%s3] sm:$0xff] %vm320, %v201
  %322 = vst.msk [vmem:[%s3 + $0x8] sm:$0xff] %vm320, %v204
  %323 = vst.msk [vmem:[%s3 + $0x10] sm:$0xff] %vm320, %v207
  %324 = vst.msk [vmem:[%s3 + $0x18] sm:$0xff] %vm320, %v210
  %325 = vst.msk [vmem:[%s3 + $0x20] sm:$0xff] %vm320, %v213
  %326 = vst.msk [vmem:[%s3 + $0x28] sm:$0xff] %vm320, %v216
  %327 = vst.msk [vmem:[%s3 + $0x30] sm:$0xff] %vm320, %v219
  %328 = vst.msk [vmem:[%s3 + $0x38] sm:$0xff] %vm320, %v222
  %329 = vst.msk [vmem:[%s3 + $0x40] sm:$0xff] %vm320, %v225
  %330 = vst.msk [vmem:[%s3 + $0x48] sm:$0xff] %vm320, %v228
  %331 = vst.msk [vmem:[%s3 + $0x50] sm:$0xff] %vm320, %v231
  %332 = vst.msk [vmem:[%s3 + $0x58] sm:$0xff] %vm320, %v234
  %333 = vst.msk [vmem:[%s3 + $0x60] sm:$0xff] %vm320, %v237
  %334 = vst.msk [vmem:[%s3 + $0x68] sm:$0xff] %vm320, %v240
  %335 = vst.msk [vmem:[%s3 + $0x70] sm:$0xff] %vm320, %v243
  %336 = vst.msk [vmem:[%s3 + $0x78] sm:$0xff] %vm320, %v246
  %337 = vst.msk [vmem:[%s3 + $0x80] sm:$0xff] %vm320, %v249
  %338 = vst.msk [vmem:[%s3 + $0x88] sm:$0xff] %vm320, %v252
  %339 = vst.msk [vmem:[%s3 + $0x90] sm:$0xff] %vm320, %v255
  %340 = vst.msk [vmem:[%s3 + $0x98] sm:$0xff] %vm320, %v258
  %341 = vst.msk [vmem:[%s3 + $0xa0] sm:$0xff] %vm320, %v261
  %342 = vst.msk [vmem:[%s3 + $0xa8] sm:$0xff] %vm320, %v264
  %343 = vst.msk [vmem:[%s3 + $0xb0] sm:$0xff] %vm320, %v267
  %344 = vst.msk [vmem:[%s3 + $0xb8] sm:$0xff] %vm320, %v270
  %345 = vst.msk [vmem:[%s3 + $0xc0] sm:$0xff] %vm320, %v273
  %346 = vst.msk [vmem:[%s3 + $0xc8] sm:$0xff] %vm320, %v276
  %347 = vst.msk [vmem:[%s3 + $0xd0] sm:$0xff] %vm320, %v279
  %348 = vst.msk [vmem:[%s3 + $0xd8] sm:$0xff] %vm320, %v282
  %349 = vst.msk [vmem:[%s3 + $0xe0] sm:$0xff] %vm320, %v285
  %350 = vst.msk [vmem:[%s3 + $0xe8] sm:$0xff] %vm320, %v288
  %351 = vst.msk [vmem:[%s3 + $0xf0] sm:$0xff] %vm320, %v291
  %352 = vst.msk [vmem:[%s3 + $0xf8] sm:$0xff] %vm320, %v294
  %353 = vst.msk [vmem:[%s3 + $0x100] sm:$0xff] %vm320, %v297
  %354 = vst.msk [vmem:[%s3 + $0x108] sm:$0xff] %vm320, %v300
  %355 = vst.msk [vmem:[%s3 + $0x110] sm:$0xff] %vm320, %v303
  %356 = vst.msk [vmem:[%s3 + $0x118] sm:$0xff] %vm320, %v306
  %357 = vst.msk [vmem:[%s3 + $0x120] sm:$0xff] %vm320, %v309
  %358 = vst.msk [vmem:[%s3 + $0x128] sm:$0xff] %vm320, %v312
  %359 = vst.msk [vmem:[%s3 + $0x130] sm:$0xff] %vm320, %v315
  %360 = vst.msk [vmem:[%s3 + $0x138] sm:$0xff] %vm320, %v318
  // Predicated region
  $region14: #{masked_msa_head.1} parent=0 // pred_check
    _
  $region15: #{masked_msa_head.1} parent=0 // pred_check_branch
    %362 = sbr.rel (0) target = $region17
  $region16: #{masked_msa_head.1} parent=0 // pred_region
    _
  $region17: #{masked_msa_head.1} parent=0 // pred_fallthru
    _
  // Predicated region
  $region18: #{masked_msa_head.1} parent=0 // pred_check
    _
  $region19: #{masked_msa_head.1} parent=0 // pred_check_branch
    %364 = sbr.rel (0) target = $region21
  $region20: #{masked_msa_head.1} parent=0 // pred_region
    _
  $region21: #{masked_msa_head.1} parent=0 // pred_fallthru
    _

</llo_original>
